<compile_context>
chip_gen: v6e
topology: v6e:2x2x1
jax: 0.10.0
libtpu: 0.0.40
codegen_flags: <defaults>
</compile_context>

<pallas_src>
import functools
import math

import jax
import jax.numpy as jnp
from jax.experimental import pallas as pl
from jax.experimental.pallas import tpu as pltpu


def _lcm(a, b):
    return a * b // math.gcd(a, b)


def _gelu_exact(x):
    # PyTorch nn.GELU() default = exact erf-based GELU.
    return 0.5 * x * (1.0 + jax.lax.erf(x * (1.0 / math.sqrt(2.0))))


def _const_block_spec(shape, *, single_buffer=True):
    """Whole-array block with a constant index map; single-buffered where supported."""
    index_map = lambda i: (0,) * len(shape)
    if single_buffer and hasattr(pl, "Buffered"):
        try:
            return pl.BlockSpec(shape, index_map, pipeline_mode=pl.Buffered(1))
        except TypeError:
            # Older jax without BlockSpec(pipeline_mode=...): fall back to default buffering.
            pass
    return pl.BlockSpec(shape, index_map)


def _encoder_embedding_kernel(x_ref, w1_ref, w2_ref, bias_ref, o_ref, *, seq):
    # x_ref   : (TM, In)     row tile of the flattened (B*S, In) input
    # w1_ref  : (In, E)      Linear1 weight (no bias)       [constant block, single-buffered]
    # w2_ref  : (E,  E)      Linear2 weight                 [constant block, single-buffered]
    # bias_ref: (B_pad, E)   per-batch bias = pe[:B] + b2   [constant block, f32]
    # o_ref   : (TM, E)
    tm, e = o_ref.shape
    tb = tm // seq  # whole batches per row tile (TM % seq == 0 by construction)

    h = jnp.dot(x_ref[...], w1_ref[...],
                preferred_element_type=jnp.float32,
                precision=jax.lax.Precision.HIGHEST)
    h = _gelu_exact(h)
    y = jnp.dot(h.astype(w2_ref.dtype), w2_ref[...],
                preferred_element_type=jnp.float32,
                precision=jax.lax.Precision.HIGHEST)

    # Expand the (TB, E) per-batch bias to (TM, E) on-chip (no per-row bias HBM stream).
    b = bias_ref[pl.ds(pl.program_id(0) * tb, tb), :]
    if tb == 1:
        b_rows = jnp.broadcast_to(b, (tm, e))
    else:
        b_rows = jnp.broadcast_to(b[:, None, :], (tb, seq, e)).reshape(tm, e)

    o_ref[...] = (y + b_rows).astype(o_ref.dtype)


def fold_positional_bias(pe, b2):
    """Precompute (max_len, E) bias = pe[:, 0, :] + b2 once (hoisted out of the call path)."""
    return pe[:, 0, :].astype(jnp.float32) + b2[None, :].astype(jnp.float32)


@functools.partial(jax.jit, static_argnames=("tm", "use_bf16"))
def encoder_embedding(x, w1, w2, pe_bias, *, tm=512, use_bf16=False):
    """x: (B, S, In); w1: (In, E); w2: (E, E); pe_bias: (max_len, E) = pe[:, 0, :] + b2."""
    B, S, In = x.shape
    E = w1.shape[1]
    M = B * S

    # Row tile: multiple of lcm(S, 8) so each tile holds whole batches and stays sublane
    # aligned; capped at `tm`, kept small enough for >= 2 grid steps (megacore on v7x),
    # and preferring a divisor of M so the final out[:M] is a free reshape.
    unit = _lcm(S, 8)
    n_units = -(-M // unit)
    k = max(1, tm // unit)
    if n_units >= 2:
        k = max(1, min(k, n_units // 2))
    if M % unit == 0:
        while k > 1 and n_units % k:
            k -= 1
    TM = k * unit
    G = -(-M // TM)
    M_pad = G * TM
    B_pad = M_pad // S

    # ---- wrapper-side layout plumbing (exact: zero padding only) ----
    x2 = x.reshape(M, In)
    if M_pad != M:
        x2 = jnp.pad(x2, ((0, M_pad - M), (0, 0)))

    bias = pe_bias[:B].astype(jnp.float32)  # pe indexed by *batch*, as in the torch module
    if B_pad != B:
        bias = jnp.pad(bias, ((0, B_pad - B), (0, 0)))

    if use_bf16:
        # bf16 inputs/weights, f32 accumulation (v6e/v7x MXU path). Relax tolerances if used.
        x2, w1, w2 = (a.astype(jnp.bfloat16) for a in (x2, w1, w2))

    x_item = jnp.dtype(x2.dtype).itemsize
    w_item = jnp.dtype(w1.dtype).itemsize
    out_item = jnp.dtype(x.dtype).itemsize

    # VMEM actually needed: double-buffered x/out tiles, single-buffered weights + bias,
    # plus headroom for f32 intermediates; stays far below the v7x 64 MiB physical budget.
    vmem_need = (2 * TM * In * x_item + 2 * TM * E * out_item
                 + (In * E + E * E) * w_item + B_pad * E * 4
                 + 4 * TM * E * 4)
    vmem_limit = int(min(max(8 << 20, 2 * vmem_need), 32 << 20))

    cost = pl.CostEstimate(
        flops=2 * M * In * E + 2 * M * E * E,
        transcendentals=M * E,
        bytes_accessed=(x_item * M_pad * In + w_item * (In * E + E * E)
                        + 4 * B_pad * E + out_item * M_pad * E),
    )

    out = pl.pallas_call(
        functools.partial(_encoder_embedding_kernel, seq=S),
        out_shape=jax.ShapeDtypeStruct((M_pad, E), x.dtype),
        grid_spec=pltpu.PrefetchScalarGridSpec(
            num_scalar_prefetch=0,
            grid=(G,),
            in_specs=[
                pl.BlockSpec((TM, In), lambda i: (i, 0)),
                _const_block_spec((In, E)),
                _const_block_spec((E, E)),
                _const_block_spec((B_pad, E)),
            ],
            out_specs=pl.BlockSpec((TM, E), lambda i: (i, 0)),
        ),
        compiler_params=pltpu.CompilerParams(
            dimension_semantics=("parallel",),
            vmem_limit_bytes=vmem_limit,
        ),
        cost_estimate=cost,
    )(x2, w1, w2, bias)

    if M_pad != M:
        out = out[:M]
    return out.reshape(B, S, E)


def make_positional_encoding(max_len, embed_dim, dtype=jnp.float32):
    # Mirrors the torch buffer construction exactly.
    position = jnp.arange(max_len, dtype=jnp.float32)[:, None]
    div_term = jnp.exp(
        jnp.arange(0, embed_dim, 2, dtype=jnp.float32) * (-math.log(10000.0) / embed_dim)
    )
    pe = jnp.zeros((max_len, 1, embed_dim), dtype=jnp.float32)
    pe = pe.at[:, 0, 0::2].set(jnp.sin(position * div_term))
    pe = pe.at[:, 0, 1::2].set(jnp.cos(position * div_term))
    return pe.astype(dtype)


def reference_forward(x, w1, w2, b2, pe):
    h = jax.nn.gelu(jnp.dot(x, w1, precision=jax.lax.Precision.HIGHEST), approximate=False)
    y = jnp.dot(h, w2, precision=jax.lax.Precision.HIGHEST) + b2
    return y + pe[: x.shape[0]]


if __name__ == "__main__":
    # Small, module-consistent shapes: x is (batch, seq, input_size).
    batch, seq, input_size, embed_dim, max_seq_length = 2, 8, 16, 32, 64

    key = jax.random.PRNGKey(0)
    kx, kw1, kw2, kb2 = jax.random.split(key, 4)

    x = jax.random.normal(kx, (batch, seq, input_size), dtype=jnp.float32)

    # Deterministic parameter init (uniform like torch Linear default, fixed seed).
    bound1 = 1.0 / math.sqrt(input_size)
    bound2 = 1.0 / math.sqrt(embed_dim)
    w1 = jax.random.uniform(kw1, (input_size, embed_dim), jnp.float32, -bound1, bound1)
    w2 = jax.random.uniform(kw2, (embed_dim, embed_dim), jnp.float32, -bound2, bound2)
    b2 = jax.random.uniform(kb2, (embed_dim,), jnp.float32, -bound2, bound2)

    pe = make_positional_encoding(max_seq_length, embed_dim)
    pe_bias = fold_positional_bias(pe, b2)  # folded once, outside the jitted call path

    out = encoder_embedding(x, w1, w2, pe_bias)
    out = jax.block_until_ready(out)

    ref = reference_forward(x, w1, w2, b2, pe)
    assert out.shape == (batch, seq, embed_dim)
    assert jnp.allclose(out, ref, atol=1e-5, rtol=1e-5), "mismatch vs pure-JAX reference"

    print("KERNEL_OK")
</pallas_src>

<mosaic_0001>
module attributes {stable_mosaic.version = 11 : i64} {
  func.func @_encoder_embedding_kernel(%arg0: i32, %arg1: memref<8x16xf32, #tpu.memory_space<vmem>>, %arg2: memref<16x32xf32, #tpu.memory_space<vmem>>, %arg3: memref<32x32xf32, #tpu.memory_space<vmem>>, %arg4: memref<2x32xf32, #tpu.memory_space<vmem>>, %arg5: memref<8x32xf32, #tpu.memory_space<vmem>>) attributes {dimension_semantics = [#tpu.dimension_semantics<parallel>], iteration_bounds = array<i64: 2>, scalar_prefetch = 0 : i64, scratch_operands = 0 : i64, tpu.core_type = #tpu.core_type<tc>, window_params = [{transform_indices = @transform_0, window_bounds = array<i64: 8, 16>}, {pipeline_mode = #tpu.pipeline_mode<synchronous>, transform_indices = @transform_1, window_bounds = array<i64: 16, 32>}, {pipeline_mode = #tpu.pipeline_mode<synchronous>, transform_indices = @transform_2, window_bounds = array<i64: 32, 32>}, {pipeline_mode = #tpu.pipeline_mode<synchronous>, transform_indices = @transform_3, window_bounds = array<i64: 2, 32>}, {transform_indices = @transform_4, window_bounds = array<i64: 8, 32>}]} {
    %c0 = arith.constant 0 : index
    %c0_0 = arith.constant 0 : index
    %0 = vector.load %arg1[%c0, %c0_0] : memref<8x16xf32, #tpu.memory_space<vmem>>, vector<8x16xf32>
    %c0_1 = arith.constant 0 : index
    %c0_2 = arith.constant 0 : index
    %1 = vector.load %arg2[%c0_1, %c0_2] : memref<16x32xf32, #tpu.memory_space<vmem>>, vector<16x32xf32>
    %cst = arith.constant dense<0.000000e+00> : vector<8x32xf32>
    %2 = tpu.matmul %0, %1, %cst {dimension_numbers = #tpu.dot_dimension_numbers<[1], [0], [0], [1], [0, 0, 1, 1], [], []>, precision = #tpu.contract_precision<fp32>} : vector<8x16xf32>, vector<16x32xf32>, vector<8x32xf32> -> vector<8x32xf32>
    %cst_3 = arith.constant 5.000000e-01 : f32
    %3 = vector.broadcast %cst_3 : f32 to vector<8x32xf32>
    %4 = arith.mulf %3, %2 : vector<8x32xf32>
    %cst_4 = arith.constant 0.707106769 : f32
    %5 = vector.broadcast %cst_4 : f32 to vector<8x32xf32>
    %6 = arith.mulf %2, %5 : vector<8x32xf32>
    %7 = math.erf %6 : vector<8x32xf32>
    %cst_5 = arith.constant 1.000000e+00 : f32
    %8 = vector.broadcast %cst_5 : f32 to vector<8x32xf32>
    %9 = arith.addf %8, %7 : vector<8x32xf32>
    %10 = arith.mulf %4, %9 : vector<8x32xf32>
    %c0_6 = arith.constant 0 : index
    %c0_7 = arith.constant 0 : index
    %11 = vector.load %arg3[%c0_6, %c0_7] : memref<32x32xf32, #tpu.memory_space<vmem>>, vector<32x32xf32>
    %cst_8 = arith.constant dense<0.000000e+00> : vector<8x32xf32>
    %12 = tpu.matmul %10, %11, %cst_8 {dimension_numbers = #tpu.dot_dimension_numbers<[1], [0], [0], [1], [0, 0, 1, 1], [], []>, precision = #tpu.contract_precision<fp32>} : vector<8x32xf32>, vector<32x32xf32>, vector<8x32xf32> -> vector<8x32xf32>
    %c1_i32 = arith.constant 1 : i32
    %13 = arith.muli %arg0, %c1_i32 : i32
    %14 = arith.index_cast %13 : i32 to index
    %c0_9 = arith.constant 0 : index
    %15 = vector.load %arg4[%14, %c0_9] : memref<2x32xf32, #tpu.memory_space<vmem>>, vector<1x32xf32>
    %16 = vector.shape_cast %15 : vector<1x32xf32> to vector<1x32xf32>
    %17 = vector.broadcast %16 : vector<1x32xf32> to vector<8x32xf32>
    %18 = arith.addf %12, %17 : vector<8x32xf32>
    %c0_10 = arith.constant 0 : index
    %c0_11 = arith.constant 0 : index
    %19 = vector.load %arg5[%c0_10, %c0_11] : memref<8x32xf32, #tpu.memory_space<vmem>>, vector<8x32xf32>
    tpu.vector_store %arg5[%c0_10, %c0_11], %18 {strides = array<i32>} : memref<8x32xf32, #tpu.memory_space<vmem>>, vector<8x32xf32>,
    return
  }
  func.func @transform_0(%arg0: i32) -> (i32, i32) {
    %c0_i32 = arith.constant 0 : i32
    %c0_i32_0 = arith.constant 0 : i32
    return %arg0, %c0_i32 : i32, i32
  }
  func.func @transform_1(%arg0: i32) -> (i32, i32) {
    %c0_i32 = arith.constant 0 : i32
    %c0_i32_0 = arith.constant 0 : i32
    %c0_i32_1 = arith.constant 0 : i32
    return %c0_i32, %c0_i32_0 : i32, i32
  }
  func.func @transform_2(%arg0: i32) -> (i32, i32) {
    %c0_i32 = arith.constant 0 : i32
    %c0_i32_0 = arith.constant 0 : i32
    %c0_i32_1 = arith.constant 0 : i32
    return %c0_i32, %c0_i32_0 : i32, i32
  }
  func.func @transform_3(%arg0: i32) -> (i32, i32) {
    %c0_i32 = arith.constant 0 : i32
    %c0_i32_0 = arith.constant 0 : i32
    %c0_i32_1 = arith.constant 0 : i32
    return %c0_i32, %c0_i32_0 : i32, i32
  }
  func.func @transform_4(%arg0: i32) -> (i32, i32) {
    %c0_i32 = arith.constant 0 : i32
    %c0_i32_0 = arith.constant 0 : i32
    return %arg0, %c0_i32 : i32, i32
  }
}

</mosaic_0001>

<llo_original>
// kernel: encoder_embedding.1
$region0: #{encoder_embedding.1}
  #allocation0 [shape = 'u32[]', space=smem, size = 0x4, offset = 0x4, fixed_abs, tag = 'smem constant byte address 0x4 - core index']
  #allocation1 [shape = 'u32[144,128]{1,0:T(1,128)}', space=vmem, size = 0x12000, scoped, tag = 'internal scratch']
  %s0 = inlined_call_operand.hbm [shape: f32[16,16], index: 0, kind: input, shape index: {}]
  %s1 = inlined_call_operand.hbm [shape: f32[16,32], index: 1, kind: input, shape index: {}]
  %s2 = inlined_call_operand.vmem [shape: f32[32,32], index: 2, kind: input, shape index: {}]
  %s3 = inlined_call_operand.vmem [shape: f32[2,32], index: 3, kind: input, shape index: {}]
  %s4 = inlined_call_operand.hbm [shape: f32[16,32], index: 4, kind: output, shape index: {}]
  %s5 = sld [smem:[#allocation0]]
  $region57: #{encoder_embedding.1} parent=0
    _
  %s7 = ssub.s32 1, %s5
  %s8 = scalar_select 0, %s7, %s5
  $region1: #{encoder_embedding.1} parent=0
    #allocation2 [shape = 'u8[8192]{0}', space=vmem, size = 0x2000, scoped, tag = 'input window, operand 0']
    #allocation3 [shape = 's32[2]{0}', space=sflag, size = 0x8, scoped, tag = 'scoped memory for encoder_embedding.1']
    #allocation4 [shape = 's32[2]{0}', space=sflag, size = 0x8, scoped, tag = 'scoped memory for encoder_embedding.1']
    #allocation5 [shape = 'u8[8192]{0}', space=vmem, size = 0x2000, scoped, tag = 'input window, operand 1, single buffered']
    #allocation6 [shape = 's32[1]{0}', space=sflag, size = 0x4, scoped, tag = 'scoped memory for encoder_embedding.1']
    #allocation7 [shape = 'u8[8192]{0}', space=vmem, size = 0x2000, scoped, tag = 'output window, operand 0']
    %9 = vsyncpa [#allocation3], 0
    %s10 = scalar_lea.sflag [#allocation3], 1
    %11 = vsyncpa %s10, 0
    %12 = vsyncpa [#allocation6], 0
    %13 = vsyncpa [#allocation4], 0
    %s14 = scalar_lea.sflag [#allocation4], 1
    %15 = vsyncpa %s14, 0
    loop: start=0, step=1, limit=4
    $region2: #{encoder_embedding.1} parent=1 // loop_pre_header
      _
    $region3: #{encoder_embedding.1} parent=1 // loop_header
      %s17 = sphi 0, %s21
      %p18 = scmp.ge.s32.totalorder %s17, 4
      %s27 = sphi 0, %s29
      %s30 = sphi 0, %s27
      %s31 = sphi 0, %s30
      %s47 = sphi 0, %s31
      %s51 = sphi 0, %s51
      %s53 = sphi 0, %s51
      %s54 = sphi 0, %s53
      %s68 = sphi 0, %s54
      %s72 = sphi 0, %s72
      %s74 = sphi 0, %s72
      %s75 = sphi 0, %s74
      %s89 = sphi 0, %s75
      %s93 = sphi 0, %s93
      %s95 = sphi 0, %s93
      %s96 = sphi 0, %s95
      %s110 = sphi 0, %s96
      %s116 = sphi 0, %s118
      %s119 = sphi 0, %s116
      %s120 = sphi 0, %s119
      %s136 = sphi 0, %s120
    $region4: #{encoder_embedding.1} parent=1 // loop_header_branch
      %20 = sbr.rel (%p18) target = $region8
    $region5: #{encoder_embedding.1} parent=1 // loop_body
      %s22 = ssub.s32 %s17, 1
      %s23 = ssub.s32 %s17, 2
      %s24 = sadd.s32 %s17, 1
      %s25 = ssub.s32 %s17, %s24
      %p26 = scmp.eq.s32.totalorder %s25, 0
      %s28 = sadd.s32 %s27, 1
      %s29 = scalar_select %p26, %s27, %s28
      %p32 = pneg %p26
      %p33 = scmp.eq.s32.totalorder %s17, 1
      %p34 = por %p32, %p33
      %p35 = scmp.ne.s32.totalorder %s27, %s30
      %p36 = scmp.eq.s32.totalorder %s17, 0
      %p37 = por %p35, %p36
      %p38 = scmp.ne.s32.totalorder %s27, %s30
      %p39 = scmp.eq.s32.totalorder %s22, 1
      %p40 = por %p38, %p39
      %p41 = scmp.ne.s32.totalorder %s30, %s31
      %p42 = scmp.eq.s32.totalorder %s22, 0
      %p43 = por %p41, %p42
      %p44 = scmp.ne.s32.totalorder %s30, %s31
      %p45 = scmp.eq.s32.totalorder %s23, 1
      %p46 = por %p44, %p45
      %p48 = scmp.ne.s32.totalorder %s31, %s47
      %p49 = scmp.eq.s32.totalorder %s23, 0
      %p50 = por %p48, %p49
      %s52 = sadd.s32 %s51, 1
      %p55 = scmp.eq.s32.totalorder %s17, 1
      %p56 = scmp.ne.s32.totalorder %s51, %s53
      %p57 = scmp.eq.s32.totalorder %s17, 0
      %p58 = por %p56, %p57
      %p59 = scmp.ne.s32.totalorder %s51, %s53
      %p60 = scmp.eq.s32.totalorder %s22, 1
      %p61 = por %p59, %p60
      %p62 = scmp.ne.s32.totalorder %s53, %s54
      %p63 = scmp.eq.s32.totalorder %s22, 0
      %p64 = por %p62, %p63
      %p65 = scmp.ne.s32.totalorder %s53, %s54
      %p66 = scmp.eq.s32.totalorder %s23, 1
      %p67 = por %p65, %p66
      %p69 = scmp.ne.s32.totalorder %s54, %s68
      %p70 = scmp.eq.s32.totalorder %s23, 0
      %p71 = por %p69, %p70
      %s73 = sadd.s32 %s72, 1
      %p76 = scmp.eq.s32.totalorder %s17, 1
      %p77 = scmp.ne.s32.totalorder %s72, %s74
      %p78 = scmp.eq.s32.totalorder %s17, 0
      %p79 = por %p77, %p78
      %p80 = scmp.ne.s32.totalorder %s72, %s74
      %p81 = scmp.eq.s32.totalorder %s22, 1
      %p82 = por %p80, %p81
      %p83 = scmp.ne.s32.totalorder %s74, %s75
      %p84 = scmp.eq.s32.totalorder %s22, 0
      %p85 = por %p83, %p84
      %p86 = scmp.ne.s32.totalorder %s74, %s75
      %p87 = scmp.eq.s32.totalorder %s23, 1
      %p88 = por %p86, %p87
      %p90 = scmp.ne.s32.totalorder %s75, %s89
      %p91 = scmp.eq.s32.totalorder %s23, 0
      %p92 = por %p90, %p91
      %s94 = sadd.s32 %s93, 1
      %p97 = scmp.eq.s32.totalorder %s17, 1
      %p98 = scmp.ne.s32.totalorder %s93, %s95
      %p99 = scmp.eq.s32.totalorder %s17, 0
      %p100 = por %p98, %p99
      %p101 = scmp.ne.s32.totalorder %s93, %s95
      %p102 = scmp.eq.s32.totalorder %s22, 1
      %p103 = por %p101, %p102
      %p104 = scmp.ne.s32.totalorder %s95, %s96
      %p105 = scmp.eq.s32.totalorder %s22, 0
      %p106 = por %p104, %p105
      %p107 = scmp.ne.s32.totalorder %s95, %s96
      %p108 = scmp.eq.s32.totalorder %s23, 1
      %p109 = por %p107, %p108
      %p111 = scmp.ne.s32.totalorder %s96, %s110
      %p112 = scmp.eq.s32.totalorder %s23, 0
      %p113 = por %p111, %p112
      %s114 = ssub.s32 %s17, %s24
      %p115 = scmp.eq.s32.totalorder %s114, 0
      %s117 = sadd.s32 %s116, 1
      %s118 = scalar_select %p115, %s116, %s117
      %p121 = pneg %p115
      %p122 = scmp.eq.s32.totalorder %s17, 1
      %p123 = por %p121, %p122
      %p124 = scmp.ne.s32.totalorder %s116, %s119
      %p125 = scmp.eq.s32.totalorder %s17, 0
      %p126 = por %p124, %p125
      %p127 = scmp.ne.s32.totalorder %s116, %s119
      %p128 = scmp.eq.s32.totalorder %s22, 1
      %p129 = por %p127, %p128
      %p130 = scmp.ne.s32.totalorder %s119, %s120
      %p131 = scmp.eq.s32.totalorder %s22, 0
      %p132 = por %p130, %p131
      %p133 = scmp.ne.s32.totalorder %s119, %s120
      %p134 = scmp.eq.s32.totalorder %s23, 1
      %p135 = por %p133, %p134
      %p137 = scmp.ne.s32.totalorder %s120, %s136
      %p138 = scmp.eq.s32.totalorder %s23, 0
      %p139 = por %p137, %p138
      %p140 = scmp.le.s32.totalorder 1, %s17
      %p141 = scmp.lt.s32.totalorder %s17, 3
      %p142 = pnand %p140, %p141
      %p143 = pneg %p142
      // Predicated region
      $region9: #{encoder_embedding.1} parent=5 // pred_check
        _
      $region10: #{encoder_embedding.1} parent=5 // pred_check_branch
        %145 = sbr.rel (%p142) target = $region12
      $region11: #{encoder_embedding.1} parent=5 // pred_region
        %s146 = ssub.s32 %s17, 1
        // Predicated region
        $region13: #{encoder_embedding.1} parent=11 // pred_check
          %p147 = pneg %p64
        $region14: #{encoder_embedding.1} parent=11 // pred_check_branch
          %149 = sbr.rel (%p147) target = $region16
        $region15: #{encoder_embedding.1} parent=11 // pred_region
          %s151 = ssub.s32 256, 256
          %152 = vsyncadd [#allocation6], %s151
          %s153 = sshll.u32 [#allocation5], 4
          %s154 = int_to_ptr.vmem [resolvable:$true] %s153
          %159 = dma.hbm_to_vmem [thread:$0]  %s1, 256, %s154, [#allocation6], 128, 128, 8
        $region16: #{encoder_embedding.1} parent=11 // pred_fallthru
          _
        // Predicated region
        $region17: #{encoder_embedding.1} parent=11 // pred_check
          %p160 = pneg %p85
        $region18: #{encoder_embedding.1} parent=11 // pred_check_branch
          %162 = sbr.rel (%p160) target = $region20
        $region19: #{encoder_embedding.1} parent=11 // pred_region
          _
        $region20: #{encoder_embedding.1} parent=11 // pred_fallthru
          _
        // Predicated region
        $region21: #{encoder_embedding.1} parent=11 // pred_check
          %p163 = pneg %p106
        $region22: #{encoder_embedding.1} parent=11 // pred_check_branch
          %165 = sbr.rel (%p163) target = $region24
        $region23: #{encoder_embedding.1} parent=11 // pred_region
          _
        $region24: #{encoder_embedding.1} parent=11 // pred_fallthru
          _
      $region12: #{encoder_embedding.1} parent=5 // pred_fallthru
        _
      %p166 = scmp.lt.s32.totalorder %s17, 2
      // Predicated region
      $region25: #{encoder_embedding.1} parent=5 // pred_check
        %p167 = pneg %p166
      $region26: #{encoder_embedding.1} parent=5 // pred_check_branch
        %169 = sbr.rel (%p167) target = $region28
      $region27: #{encoder_embedding.1} parent=5 // pred_region
        // Predicated region
        $region29: #{encoder_embedding.1} parent=27 // pred_check
          %p170 = pneg %p37
        $region30: #{encoder_embedding.1} parent=27 // pred_check_branch
          %172 = sbr.rel (%p170) target = $region32
        $region31: #{encoder_embedding.1} parent=27 // pred_region
          %s173 = sand.u32 %s27, 1
          %s174 = scalar_lea.sflag [#allocation3], %s173
          %s175 = sand.u32 %s27, 1
          %s176 = smul.addr %s175, 8
          %s177 = scalar_lea.vmem [#allocation2], %s176
          %s179 = ssub.s32 128, 128
          %180 = vsyncadd %s174, %s179
          %s181 = smul.addr %s17, 128
          %s182 = scalar_lea.hbm %s0, %s181
          %s184 = sshll.u32 %s177, 4
          %s185 = int_to_ptr.vmem [resolvable:$true] %s184
          %187 = dma.hbm_to_vmem [thread:$0]  %s182, 128, %s185, %s174
        $region32: #{encoder_embedding.1} parent=27 // pred_fallthru
          _
      $region28: #{encoder_embedding.1} parent=5 // pred_fallthru
        _
      %p188 = scmp.le.s32.totalorder 1, %s17
      %p189 = scmp.lt.s32.totalorder %s17, 3
      %p190 = pnand %p188, %p189
      %p191 = pneg %p190
      // Predicated region
      $region33: #{encoder_embedding.1} parent=5 // pred_check
        _
      $region34: #{encoder_embedding.1} parent=5 // pred_check_branch
        %193 = sbr.rel (%p190) target = $region36
      $region35: #{encoder_embedding.1} parent=5 // pred_region
        %s194 = ssub.s32 %s17, 1
        %s195 = sand.u32 %s30, 1
        %s196 = scalar_lea.sflag [#allocation3], %s195
        %s197 = sand.u32 %s30, 1
        %s198 = smul.addr %s197, 8
        %s199 = scalar_lea.vmem [#allocation2], %s198
        // Predicated region
        $region37: #{encoder_embedding.1} parent=35 // pred_check
          %p200 = pneg %p43
        $region38: #{encoder_embedding.1} parent=35 // pred_check_branch
          %202 = sbr.rel (%p200) target = $region40
        $region39: #{encoder_embedding.1} parent=35 // pred_region
          %203 = dma.done %s196, 128
        $region40: #{encoder_embedding.1} parent=35 // pred_fallthru
          _
        // Predicated region
        $region41: #{encoder_embedding.1} parent=35 // pred_check
          %p204 = pneg %p64
        $region42: #{encoder_embedding.1} parent=35 // pred_check_branch
          %206 = sbr.rel (%p204) target = $region44
        $region43: #{encoder_embedding.1} parent=35 // pred_region
          %207 = dma.done [#allocation6], 256
        $region44: #{encoder_embedding.1} parent=35 // pred_fallthru
          _
        %s208 = sand.u32 %s30, 1
        %s209 = scalar_lea.sflag [#allocation3], %s208
        %s210 = sand.u32 %s30, 1
        %s211 = smul.addr %s210, 8
        %s212 = scalar_lea.vmem [#allocation2], %s211
        %p213 = pneg %p43
        %p214 = pneg %p40
        %p215 = pneg %p64
        %p216 = pneg %p61
        %p217 = pneg %p85
        %p218 = pneg %p82
        %p219 = pneg %p106
        %p220 = pneg %p103
        %p221 = pneg %p132
        %p222 = pneg %p129
        %s223 = sand.u32 %s119, 1
        %s224 = scalar_lea.sflag [#allocation4], %s223
        %s225 = sand.u32 %s119, 1
        %s226 = smul.addr %s225, 8
        %s227 = scalar_lea.vmem [#allocation7], %s226
        %v228 = vld [vmem:[%s199] sm:$0xff]
        %v229 = vld [vmem:[#allocation5] sm:$0xff]
        %v230 = vld [vmem:[#allocation5 + $0x8] sm:$0xff]
        %vm231 = vcmask 130048
        %v233 = vsel %vm231, %v228, 0
        %235 = vmatprep.subr.mxu0 0.0
        %236 = vmatpush1.msra.mxu0 0.0
        %237 = vmatprep.subr.mxu0 0.0
        %238 = vmatpush1.msra.mxu0 0.0
        %239 = vmatprep.subr.mxu0 0.0
        %240 = vmatpush1.msra.mxu0 0.0
        %241 = vmatprep.subr.mxu0 0.0
        %242 = vmatpush1.msra.mxu0 0.0
        %243 = vmatprep.subr.mxu0 0.0
        %244 = vmatpush1.msra.mxu0 0.0
        %245 = vmatprep.subr.mxu0 0.0
        %246 = vmatpush1.msra.mxu0 0.0
        %247 = vmatprep.subr.mxu0 0.0
        %248 = vmatpush1.msra.mxu0 0.0
        %249 = vmatprep.subr.mxu0 0.0
        %250 = vmatpush1.msra.mxu0 0.0
        %251 = vmatprep.subr.mxu0 0.0
        %252 = vmatpush1.msra.mxu0 0.0
        %253 = vmatprep.subr.mxu0 0.0
        %254 = vmatpush1.msra.mxu0 0.0
        %255 = vmatprep.subr.mxu0 0.0
        %256 = vmatpush1.msra.mxu0 0.0
        %257 = vmatprep.subr.mxu0 0.0
        %258 = vmatpush1.msra.mxu0 0.0
        %259 = vmatprep.subr.mxu0 0.0
        %260 = vmatpush1.msra.mxu0 0.0
        %261 = vmatprep.subr.mxu0 0.0
        %262 = vmatpush1.msra.mxu0 0.0
        %263 = vmatprep.subr.mxu0 0.0
        %v264 = vand.u32 %v230, 4294901760
        %265 = vmatpush1.msra.mxu0 %v264
        %266 = vmatprep.subr.mxu0 0.0
        %v267 = vand.u32 %v229, 4294901760
        %268 = vmatpush1.msra.mxu0 %v267
        %269 = vmatprep.subr.mxu0 0.0
        %270 = vmatpush2.msra.mxu0 0.0
        %271 = vmatprep.subr.mxu0 0.0
        %272 = vmatpush2.msra.mxu0 0.0
        %273 = vmatprep.subr.mxu0 0.0
        %274 = vmatpush2.msra.mxu0 0.0
        %275 = vmatprep.subr.mxu0 0.0
        %276 = vmatpush2.msra.mxu0 0.0
        %277 = vmatprep.subr.mxu0 0.0
        %278 = vmatpush2.msra.mxu0 0.0
        %279 = vmatprep.subr.mxu0 0.0
        %280 = vmatpush2.msra.mxu0 0.0
        %281 = vmatprep.subr.mxu0 0.0
        %282 = vmatpush2.msra.mxu0 0.0
        %283 = vmatprep.subr.mxu0 0.0
        %284 = vmatpush2.msra.mxu0 0.0
        %285 = vmatprep.subr.mxu0 0.0
        %286 = vmatpush2.msra.mxu0 0.0
        %287 = vmatprep.subr.mxu0 0.0
        %288 = vmatpush2.msra.mxu0 0.0
        %289 = vmatprep.subr.mxu0 0.0
        %290 = vmatpush2.msra.mxu0 0.0
        %291 = vmatprep.subr.mxu0 0.0
        %292 = vmatpush2.msra.mxu0 0.0
        %293 = vmatprep.subr.mxu0 0.0
        %294 = vmatpush2.msra.mxu0 0.0
        %295 = vmatprep.subr.mxu0 0.0
        %296 = vmatpush2.msra.mxu0 0.0
        %297 = vmatprep.subr.mxu0 0.0
        %298 = vmatpush2.msra.mxu0 0.0
        %299 = vmatprep.subr.mxu0 0.0
        %300 = vmatpush2.msra.mxu0 0.0
        %301 = vmatprep.mubr.f32.mxu0 0.0
        %v302 = vand.u32 %v233, 4294901760
        %v303 = vsub.f32 %v233, %v302
        %v304 = vand.u32 %v303, 4294901760
        %v305 = vsub.f32 %v303, %v304
        %v306 = vand.u32 %v305, 4294901760
        %307 = vmatmul.mubr.f32.gmra.mxu0 %v306
        %v308 = vpop.f32.mrf.mxu0
        %v309 = vadd.f32 0.0, %v308
        %v310 = vpop.f32.mrf.mxu0
        %311 = vdwg.mxu0
        %312 = vmatprep.subr.mxu0 0.0
        %313 = vmatpush1.msra.mxu0 0.0
        %314 = vmatprep.subr.mxu0 0.0
        %315 = vmatpush1.msra.mxu0 0.0
        %316 = vmatprep.subr.mxu0 0.0
        %317 = vmatpush1.msra.mxu0 0.0
        %318 = vmatprep.subr.mxu0 0.0
        %319 = vmatpush1.msra.mxu0 0.0
        %320 = vmatprep.subr.mxu0 0.0
        %321 = vmatpush1.msra.mxu0 0.0
        %322 = vmatprep.subr.mxu0 0.0
        %323 = vmatpush1.msra.mxu0 0.0
        %324 = vmatprep.subr.mxu0 0.0
        %325 = vmatpush1.msra.mxu0 0.0
        %326 = vmatprep.subr.mxu0 0.0
        %327 = vmatpush1.msra.mxu0 0.0
        %328 = vmatprep.subr.mxu0 0.0
        %329 = vmatpush1.msra.mxu0 0.0
        %330 = vmatprep.subr.mxu0 0.0
        %331 = vmatpush1.msra.mxu0 0.0
        %332 = vmatprep.subr.mxu0 0.0
        %333 = vmatpush1.msra.mxu0 0.0
        %334 = vmatprep.subr.mxu0 0.0
        %335 = vmatpush1.msra.mxu0 0.0
        %336 = vmatprep.subr.mxu0 0.0
        %337 = vmatpush1.msra.mxu0 0.0
        %338 = vmatprep.subr.mxu0 0.0
        %339 = vmatpush1.msra.mxu0 0.0
        %340 = vmatprep.subr.mxu0 0.0
        %v341 = vand.u32 %v230, 4294901760
        %v342 = vsub.f32 %v230, %v341
        %v343 = vand.u32 %v342, 4294901760
        %v344 = vsub.f32 %v342, %v343
        %v345 = vand.u32 %v344, 4294901760
        %346 = vmatpush1.msra.mxu0 %v345
        %347 = vmatprep.subr.mxu0 0.0
        %v348 = vand.u32 %v229, 4294901760
        %v349 = vsub.f32 %v229, %v348
        %v350 = vand.u32 %v349, 4294901760
        %v351 = vsub.f32 %v349, %v350
        %v352 = vand.u32 %v351, 4294901760
        %353 = vmatpush1.msra.mxu0 %v352
        %354 = vmatprep.subr.mxu0 0.0
        %355 = vmatpush2.msra.mxu0 0.0
        %356 = vmatprep.subr.mxu0 0.0
        %357 = vmatpush2.msra.mxu0 0.0
        %358 = vmatprep.subr.mxu0 0.0
        %359 = vmatpush2.msra.mxu0 0.0
        %360 = vmatprep.subr.mxu0 0.0
        %361 = vmatpush2.msra.mxu0 0.0
        %362 = vmatprep.subr.mxu0 0.0
        %363 = vmatpush2.msra.mxu0 0.0
        %364 = vmatprep.subr.mxu0 0.0
        %365 = vmatpush2.msra.mxu0 0.0
        %366 = vmatprep.subr.mxu0 0.0
        %367 = vmatpush2.msra.mxu0 0.0
        %368 = vmatprep.subr.mxu0 0.0
        %369 = vmatpush2.msra.mxu0 0.0
        %370 = vmatprep.subr.mxu0 0.0
        %371 = vmatpush2.msra.mxu0 0.0
        %372 = vmatprep.subr.mxu0 0.0
        %373 = vmatpush2.msra.mxu0 0.0
        %374 = vmatprep.subr.mxu0 0.0
        %375 = vmatpush2.msra.mxu0 0.0
        %376 = vmatprep.subr.mxu0 0.0
        %377 = vmatpush2.msra.mxu0 0.0
        %378 = vmatprep.subr.mxu0 0.0
        %379 = vmatpush2.msra.mxu0 0.0
        %380 = vmatprep.subr.mxu0 0.0
        %381 = vmatpush2.msra.mxu0 0.0
        %382 = vmatprep.subr.mxu0 0.0
        %383 = vmatpush2.msra.mxu0 0.0
        %384 = vmatprep.subr.mxu0 0.0
        %385 = vmatpush2.msra.mxu0 0.0
        %386 = vmatprep.mubr.f32.mxu0 0.0
        %v387 = vand.u32 %v233, 4294901760
        %388 = vmatmul.mubr.f32.gmra.mxu0 %v387
        %v389 = vpop.f32.mrf.mxu0
        %v390 = vadd.f32 %v309, %v389
        %v391 = vpop.f32.mrf.mxu0
        %392 = vdwg.mxu0
        %393 = vmatprep.subr.mxu0 0.0
        %394 = vmatpush1.msra.mxu0 0.0
        %395 = vmatprep.subr.mxu0 0.0
        %396 = vmatpush1.msra.mxu0 0.0
        %397 = vmatprep.subr.mxu0 0.0
        %398 = vmatpush1.msra.mxu0 0.0
        %399 = vmatprep.subr.mxu0 0.0
        %400 = vmatpush1.msra.mxu0 0.0
        %401 = vmatprep.subr.mxu0 0.0
        %402 = vmatpush1.msra.mxu0 0.0
        %403 = vmatprep.subr.mxu0 0.0
        %404 = vmatpush1.msra.mxu0 0.0
        %405 = vmatprep.subr.mxu0 0.0
        %406 = vmatpush1.msra.mxu0 0.0
        %407 = vmatprep.subr.mxu0 0.0
        %408 = vmatpush1.msra.mxu0 0.0
        %409 = vmatprep.subr.mxu0 0.0
        %410 = vmatpush1.msra.mxu0 0.0
        %411 = vmatprep.subr.mxu0 0.0
        %412 = vmatpush1.msra.mxu0 0.0
        %413 = vmatprep.subr.mxu0 0.0
        %414 = vmatpush1.msra.mxu0 0.0
        %415 = vmatprep.subr.mxu0 0.0
        %416 = vmatpush1.msra.mxu0 0.0
        %417 = vmatprep.subr.mxu0 0.0
        %418 = vmatpush1.msra.mxu0 0.0
        %419 = vmatprep.subr.mxu0 0.0
        %420 = vmatpush1.msra.mxu0 0.0
        %421 = vmatprep.subr.mxu0 0.0
        %v422 = vand.u32 %v230, 4294901760
        %v423 = vsub.f32 %v230, %v422
        %424 = vmatpush1.msra.mxu0 %v423
        %425 = vmatprep.subr.mxu0 0.0
        %v426 = vand.u32 %v229, 4294901760
        %v427 = vsub.f32 %v229, %v426
        %428 = vmatpush1.msra.mxu0 %v427
        %429 = vmatprep.subr.mxu0 0.0
        %430 = vmatpush2.msra.mxu0 0.0
        %431 = vmatprep.subr.mxu0 0.0
        %432 = vmatpush2.msra.mxu0 0.0
        %433 = vmatprep.subr.mxu0 0.0
        %434 = vmatpush2.msra.mxu0 0.0
        %435 = vmatprep.subr.mxu0 0.0
        %436 = vmatpush2.msra.mxu0 0.0
        %437 = vmatprep.subr.mxu0 0.0
        %438 = vmatpush2.msra.mxu0 0.0
        %439 = vmatprep.subr.mxu0 0.0
        %440 = vmatpush2.msra.mxu0 0.0
        %441 = vmatprep.subr.mxu0 0.0
        %442 = vmatpush2.msra.mxu0 0.0
        %443 = vmatprep.subr.mxu0 0.0
        %444 = vmatpush2.msra.mxu0 0.0
        %445 = vmatprep.subr.mxu0 0.0
        %446 = vmatpush2.msra.mxu0 0.0
        %447 = vmatprep.subr.mxu0 0.0
        %448 = vmatpush2.msra.mxu0 0.0
        %449 = vmatprep.subr.mxu0 0.0
        %450 = vmatpush2.msra.mxu0 0.0
        %451 = vmatprep.subr.mxu0 0.0
        %452 = vmatpush2.msra.mxu0 0.0
        %453 = vmatprep.subr.mxu0 0.0
        %454 = vmatpush2.msra.mxu0 0.0
        %455 = vmatprep.subr.mxu0 0.0
        %456 = vmatpush2.msra.mxu0 0.0
        %457 = vmatprep.subr.mxu0 0.0
        %458 = vmatpush2.msra.mxu0 0.0
        %459 = vmatprep.subr.mxu0 0.0
        %460 = vmatpush2.msra.mxu0 0.0
        %461 = vmatprep.mubr.f32.mxu0 0.0
        %v462 = vand.u32 %v233, 4294901760
        %v463 = vsub.f32 %v233, %v462
        %464 = vmatmul.mubr.f32.gmra.mxu0 %v463
        %v465 = vpop.f32.mrf.mxu0
        %v466 = vadd.f32 %v390, %v465
        %v467 = vpop.f32.mrf.mxu0
        %468 = vdwg.mxu0
        %469 = vmatprep.subr.mxu0 0.0
        %470 = vmatpush1.msra.mxu0 0.0
        %471 = vmatprep.subr.mxu0 0.0
        %472 = vmatpush1.msra.mxu0 0.0
        %473 = vmatprep.subr.mxu0 0.0
        %474 = vmatpush1.msra.mxu0 0.0
        %475 = vmatprep.subr.mxu0 0.0
        %476 = vmatpush1.msra.mxu0 0.0
        %477 = vmatprep.subr.mxu0 0.0
        %478 = vmatpush1.msra.mxu0 0.0
        %479 = vmatprep.subr.mxu0 0.0
        %480 = vmatpush1.msra.mxu0 0.0
        %481 = vmatprep.subr.mxu0 0.0
        %482 = vmatpush1.msra.mxu0 0.0
        %483 = vmatprep.subr.mxu0 0.0
        %484 = vmatpush1.msra.mxu0 0.0
        %485 = vmatprep.subr.mxu0 0.0
        %486 = vmatpush1.msra.mxu0 0.0
        %487 = vmatprep.subr.mxu0 0.0
        %488 = vmatpush1.msra.mxu0 0.0
        %489 = vmatprep.subr.mxu0 0.0
        %490 = vmatpush1.msra.mxu0 0.0
        %491 = vmatprep.subr.mxu0 0.0
        %492 = vmatpush1.msra.mxu0 0.0
        %493 = vmatprep.subr.mxu0 0.0
        %494 = vmatpush1.msra.mxu0 0.0
        %495 = vmatprep.subr.mxu0 0.0
        %496 = vmatpush1.msra.mxu0 0.0
        %497 = vmatprep.subr.mxu0 0.0
        %v498 = vand.u32 %v230, 4294901760
        %499 = vmatpush1.msra.mxu0 %v498
        %500 = vmatprep.subr.mxu0 0.0
        %v501 = vand.u32 %v229, 4294901760
        %502 = vmatpush1.msra.mxu0 %v501
        %503 = vmatprep.subr.mxu0 0.0
        %504 = vmatpush2.msra.mxu0 0.0
        %505 = vmatprep.subr.mxu0 0.0
        %506 = vmatpush2.msra.mxu0 0.0
        %507 = vmatprep.subr.mxu0 0.0
        %508 = vmatpush2.msra.mxu0 0.0
        %509 = vmatprep.subr.mxu0 0.0
        %510 = vmatpush2.msra.mxu0 0.0
        %511 = vmatprep.subr.mxu0 0.0
        %512 = vmatpush2.msra.mxu0 0.0
        %513 = vmatprep.subr.mxu0 0.0
        %514 = vmatpush2.msra.mxu0 0.0
        %515 = vmatprep.subr.mxu0 0.0
        %516 = vmatpush2.msra.mxu0 0.0
        %517 = vmatprep.subr.mxu0 0.0
        %518 = vmatpush2.msra.mxu0 0.0
        %519 = vmatprep.subr.mxu0 0.0
        %520 = vmatpush2.msra.mxu0 0.0
        %521 = vmatprep.subr.mxu0 0.0
        %522 = vmatpush2.msra.mxu0 0.0
        %523 = vmatprep.subr.mxu0 0.0
        %524 = vmatpush2.msra.mxu0 0.0
        %525 = vmatprep.subr.mxu0 0.0
        %526 = vmatpush2.msra.mxu0 0.0
        %527 = vmatprep.subr.mxu0 0.0
        %528 = vmatpush2.msra.mxu0 0.0
        %529 = vmatprep.subr.mxu0 0.0
        %530 = vmatpush2.msra.mxu0 0.0
        %531 = vmatprep.subr.mxu0 0.0
        %532 = vmatpush2.msra.mxu0 0.0
        %533 = vmatprep.subr.mxu0 0.0
        %534 = vmatpush2.msra.mxu0 0.0
        %535 = vmatprep.mubr.f32.mxu0 0.0
        %v536 = vand.u32 %v233, 4294901760
        %v537 = vsub.f32 %v233, %v536
        %v538 = vand.u32 %v537, 4294901760
        %539 = vmatmul.mubr.f32.gmra.mxu0 %v538
        %v540 = vpop.f32.mrf.mxu0
        %v541 = vadd.f32 %v466, %v540
        %v542 = vpop.f32.mrf.mxu0
        %543 = vdwg.mxu0
        %544 = vmatprep.subr.mxu0 0.0
        %545 = vmatpush1.msra.mxu0 0.0
        %546 = vmatprep.subr.mxu0 0.0
        %547 = vmatpush1.msra.mxu0 0.0
        %548 = vmatprep.subr.mxu0 0.0
        %549 = vmatpush1.msra.mxu0 0.0
        %550 = vmatprep.subr.mxu0 0.0
        %551 = vmatpush1.msra.mxu0 0.0
        %552 = vmatprep.subr.mxu0 0.0
        %553 = vmatpush1.msra.mxu0 0.0
        %554 = vmatprep.subr.mxu0 0.0
        %555 = vmatpush1.msra.mxu0 0.0
        %556 = vmatprep.subr.mxu0 0.0
        %557 = vmatpush1.msra.mxu0 0.0
        %558 = vmatprep.subr.mxu0 0.0
        %559 = vmatpush1.msra.mxu0 0.0
        %560 = vmatprep.subr.mxu0 0.0
        %561 = vmatpush1.msra.mxu0 0.0
        %562 = vmatprep.subr.mxu0 0.0
        %563 = vmatpush1.msra.mxu0 0.0
        %564 = vmatprep.subr.mxu0 0.0
        %565 = vmatpush1.msra.mxu0 0.0
        %566 = vmatprep.subr.mxu0 0.0
        %567 = vmatpush1.msra.mxu0 0.0
        %568 = vmatprep.subr.mxu0 0.0
        %569 = vmatpush1.msra.mxu0 0.0
        %570 = vmatprep.subr.mxu0 0.0
        %571 = vmatpush1.msra.mxu0 0.0
        %572 = vmatprep.subr.mxu0 0.0
        %v573 = vand.u32 %v230, 4294901760
        %v574 = vsub.f32 %v230, %v573
        %v575 = vand.u32 %v574, 4294901760
        %576 = vmatpush1.msra.mxu0 %v575
        %577 = vmatprep.subr.mxu0 0.0
        %v578 = vand.u32 %v229, 4294901760
        %v579 = vsub.f32 %v229, %v578
        %v580 = vand.u32 %v579, 4294901760
        %581 = vmatpush1.msra.mxu0 %v580
        %582 = vmatprep.subr.mxu0 0.0
        %583 = vmatpush2.msra.mxu0 0.0
        %584 = vmatprep.subr.mxu0 0.0
        %585 = vmatpush2.msra.mxu0 0.0
        %586 = vmatprep.subr.mxu0 0.0
        %587 = vmatpush2.msra.mxu0 0.0
        %588 = vmatprep.subr.mxu0 0.0
        %589 = vmatpush2.msra.mxu0 0.0
        %590 = vmatprep.subr.mxu0 0.0
        %591 = vmatpush2.msra.mxu0 0.0
        %592 = vmatprep.subr.mxu0 0.0
        %593 = vmatpush2.msra.mxu0 0.0
        %594 = vmatprep.subr.mxu0 0.0
        %595 = vmatpush2.msra.mxu0 0.0
        %596 = vmatprep.subr.mxu0 0.0
        %597 = vmatpush2.msra.mxu0 0.0
        %598 = vmatprep.subr.mxu0 0.0
        %599 = vmatpush2.msra.mxu0 0.0
        %600 = vmatprep.subr.mxu0 0.0
        %601 = vmatpush2.msra.mxu0 0.0
        %602 = vmatprep.subr.mxu0 0.0
        %603 = vmatpush2.msra.mxu0 0.0
        %604 = vmatprep.subr.mxu0 0.0
        %605 = vmatpush2.msra.mxu0 0.0
        %606 = vmatprep.subr.mxu0 0.0
        %607 = vmatpush2.msra.mxu0 0.0
        %608 = vmatprep.subr.mxu0 0.0
        %609 = vmatpush2.msra.mxu0 0.0
        %610 = vmatprep.subr.mxu0 0.0
        %611 = vmatpush2.msra.mxu0 0.0
        %612 = vmatprep.subr.mxu0 0.0
        %613 = vmatpush2.msra.mxu0 0.0
        %614 = vmatprep.mubr.f32.mxu0 0.0
        %v615 = vand.u32 %v233, 4294901760
        %616 = vmatmul.mubr.f32.gmra.mxu0 %v615
        %v617 = vpop.f32.mrf.mxu0
        %v618 = vadd.f32 %v541, %v617
        %v619 = vpop.f32.mrf.mxu0
        %620 = vdwg.mxu0
        %621 = vmatprep.subr.mxu0 0.0
        %622 = vmatpush1.msra.mxu0 0.0
        %623 = vmatprep.subr.mxu0 0.0
        %624 = vmatpush1.msra.mxu0 0.0
        %625 = vmatprep.subr.mxu0 0.0
        %626 = vmatpush1.msra.mxu0 0.0
        %627 = vmatprep.subr.mxu0 0.0
        %628 = vmatpush1.msra.mxu0 0.0
        %629 = vmatprep.subr.mxu0 0.0
        %630 = vmatpush1.msra.mxu0 0.0
        %631 = vmatprep.subr.mxu0 0.0
        %632 = vmatpush1.msra.mxu0 0.0
        %633 = vmatprep.subr.mxu0 0.0
        %634 = vmatpush1.msra.mxu0 0.0
        %635 = vmatprep.subr.mxu0 0.0
        %636 = vmatpush1.msra.mxu0 0.0
        %637 = vmatprep.subr.mxu0 0.0
        %638 = vmatpush1.msra.mxu0 0.0
        %639 = vmatprep.subr.mxu0 0.0
        %640 = vmatpush1.msra.mxu0 0.0
        %641 = vmatprep.subr.mxu0 0.0
        %642 = vmatpush1.msra.mxu0 0.0
        %643 = vmatprep.subr.mxu0 0.0
        %644 = vmatpush1.msra.mxu0 0.0
        %645 = vmatprep.subr.mxu0 0.0
        %646 = vmatpush1.msra.mxu0 0.0
        %647 = vmatprep.subr.mxu0 0.0
        %648 = vmatpush1.msra.mxu0 0.0
        %649 = vmatprep.subr.mxu0 0.0
        %v650 = vand.u32 %v230, 4294901760
        %651 = vmatpush1.msra.mxu0 %v650
        %652 = vmatprep.subr.mxu0 0.0
        %v653 = vand.u32 %v229, 4294901760
        %654 = vmatpush1.msra.mxu0 %v653
        %655 = vmatprep.subr.mxu0 0.0
        %656 = vmatpush2.msra.mxu0 0.0
        %657 = vmatprep.subr.mxu0 0.0
        %658 = vmatpush2.msra.mxu0 0.0
        %659 = vmatprep.subr.mxu0 0.0
        %660 = vmatpush2.msra.mxu0 0.0
        %661 = vmatprep.subr.mxu0 0.0
        %662 = vmatpush2.msra.mxu0 0.0
        %663 = vmatprep.subr.mxu0 0.0
        %664 = vmatpush2.msra.mxu0 0.0
        %665 = vmatprep.subr.mxu0 0.0
        %666 = vmatpush2.msra.mxu0 0.0
        %667 = vmatprep.subr.mxu0 0.0
        %668 = vmatpush2.msra.mxu0 0.0
        %669 = vmatprep.subr.mxu0 0.0
        %670 = vmatpush2.msra.mxu0 0.0
        %671 = vmatprep.subr.mxu0 0.0
        %672 = vmatpush2.msra.mxu0 0.0
        %673 = vmatprep.subr.mxu0 0.0
        %674 = vmatpush2.msra.mxu0 0.0
        %675 = vmatprep.subr.mxu0 0.0
        %676 = vmatpush2.msra.mxu0 0.0
        %677 = vmatprep.subr.mxu0 0.0
        %678 = vmatpush2.msra.mxu0 0.0
        %679 = vmatprep.subr.mxu0 0.0
        %680 = vmatpush2.msra.mxu0 0.0
        %681 = vmatprep.subr.mxu0 0.0
        %682 = vmatpush2.msra.mxu0 0.0
        %683 = vmatprep.subr.mxu0 0.0
        %684 = vmatpush2.msra.mxu0 0.0
        %685 = vmatprep.subr.mxu0 0.0
        %686 = vmatpush2.msra.mxu0 0.0
        %687 = vmatprep.mubr.f32.mxu0 0.0
        %v688 = vand.u32 %v233, 4294901760
        %689 = vmatmul.mubr.f32.gmra.mxu0 %v688
        %v690 = vpop.f32.mrf.mxu0
        %v691 = vadd.f32 %v618, %v690
        %v692 = vpop.f32.mrf.mxu0
        %693 = vdwg.mxu0
        %v694 = vmul.f32 %v691, 0.5
        %v695 = vmul.f32 %v691, 0.70710677
        %v696 = verf.f32.pop %v695
        %v697 = vadd.f32 %v696, 1.0
        %v698 = vmul.f32 %v694, %v697
        %v699 = vld [vmem:[%s2] sm:$0xff]
        %v700 = vld [vmem:[%s2 + $0x8] sm:$0xff]
        %v701 = vld [vmem:[%s2 + $0x10] sm:$0xff]
        %v702 = vld [vmem:[%s2 + $0x18] sm:$0xff]
        %s703 = scalar_lea.vmem %s3, %s22
        %v704 = vld [vmem:[%s703] sm:$0x1]
        %v705 = vlaneseq
        %v706 = vshrl.u32 %v705, 7
        %v707 = vsub.s32 0, %v706
        %v708 = vrot.slane %v704, %v707
        %vm709 = vcmask 261120
        %v711 = vsel %vm709, %v698, 0
        %713 = vmatprep.subr.mxu0 0.0
        %714 = vmatpush1.msra.mxu0 0.0
        %715 = vmatprep.subr.mxu0 0.0
        %716 = vmatpush1.msra.mxu0 0.0
        %717 = vmatprep.subr.mxu0 0.0
        %718 = vmatpush1.msra.mxu0 0.0
        %719 = vmatprep.subr.mxu0 0.0
        %720 = vmatpush1.msra.mxu0 0.0
        %721 = vmatprep.subr.mxu0 0.0
        %722 = vmatpush1.msra.mxu0 0.0
        %723 = vmatprep.subr.mxu0 0.0
        %724 = vmatpush1.msra.mxu0 0.0
        %725 = vmatprep.subr.mxu0 0.0
        %726 = vmatpush1.msra.mxu0 0.0
        %727 = vmatprep.subr.mxu0 0.0
        %728 = vmatpush1.msra.mxu0 0.0
        %729 = vmatprep.subr.mxu0 0.0
        %730 = vmatpush1.msra.mxu0 0.0
        %731 = vmatprep.subr.mxu0 0.0
        %732 = vmatpush1.msra.mxu0 0.0
        %733 = vmatprep.subr.mxu0 0.0
        %734 = vmatpush1.msra.mxu0 0.0
        %735 = vmatprep.subr.mxu0 0.0
        %736 = vmatpush1.msra.mxu0 0.0
        %737 = vmatprep.subr.mxu0 0.0
        %v738 = vand.u32 %v702, 4294901760
        %739 = vmatpush1.msra.mxu0 %v738
        %740 = vmatprep.subr.mxu0 0.0
        %v741 = vand.u32 %v701, 4294901760
        %742 = vmatpush1.msra.mxu0 %v741
        %743 = vmatprep.subr.mxu0 0.0
        %v744 = vand.u32 %v700, 4294901760
        %745 = vmatpush1.msra.mxu0 %v744
        %746 = vmatprep.subr.mxu0 0.0
        %v747 = vand.u32 %v699, 4294901760
        %748 = vmatpush1.msra.mxu0 %v747
        %749 = vmatprep.subr.mxu0 0.0
        %750 = vmatpush2.msra.mxu0 0.0
        %751 = vmatprep.subr.mxu0 0.0
        %752 = vmatpush2.msra.mxu0 0.0
        %753 = vmatprep.subr.mxu0 0.0
        %754 = vmatpush2.msra.mxu0 0.0
        %755 = vmatprep.subr.mxu0 0.0
        %756 = vmatpush2.msra.mxu0 0.0
        %757 = vmatprep.subr.mxu0 0.0
        %758 = vmatpush2.msra.mxu0 0.0
        %759 = vmatprep.subr.mxu0 0.0
        %760 = vmatpush2.msra.mxu0 0.0
        %761 = vmatprep.subr.mxu0 0.0
        %762 = vmatpush2.msra.mxu0 0.0
        %763 = vmatprep.subr.mxu0 0.0
        %764 = vmatpush2.msra.mxu0 0.0
        %765 = vmatprep.subr.mxu0 0.0
        %766 = vmatpush2.msra.mxu0 0.0
        %767 = vmatprep.subr.mxu0 0.0
        %768 = vmatpush2.msra.mxu0 0.0
        %769 = vmatprep.subr.mxu0 0.0
        %770 = vmatpush2.msra.mxu0 0.0
        %771 = vmatprep.subr.mxu0 0.0
        %772 = vmatpush2.msra.mxu0 0.0
        %773 = vmatprep.subr.mxu0 0.0
        %774 = vmatpush2.msra.mxu0 0.0
        %775 = vmatprep.subr.mxu0 0.0
        %776 = vmatpush2.msra.mxu0 0.0
        %777 = vmatprep.subr.mxu0 0.0
        %778 = vmatpush2.msra.mxu0 0.0
        %779 = vmatprep.subr.mxu0 0.0
        %780 = vmatpush2.msra.mxu0 0.0
        %781 = vmatprep.mubr.f32.mxu0 0.0
        %v782 = vand.u32 %v711, 4294901760
        %v783 = vsub.f32 %v711, %v782
        %v784 = vand.u32 %v783, 4294901760
        %v785 = vsub.f32 %v783, %v784
        %v786 = vand.u32 %v785, 4294901760
        %787 = vmatmul.mubr.f32.gmra.mxu0 %v786
        %v788 = vpop.f32.mrf.mxu0
        %v789 = vadd.f32 %v708, %v788
        %v790 = vpop.f32.mrf.mxu0
        %791 = vdwg.mxu0
        %792 = vmatprep.subr.mxu0 0.0
        %793 = vmatpush1.msra.mxu0 0.0
        %794 = vmatprep.subr.mxu0 0.0
        %795 = vmatpush1.msra.mxu0 0.0
        %796 = vmatprep.subr.mxu0 0.0
        %797 = vmatpush1.msra.mxu0 0.0
        %798 = vmatprep.subr.mxu0 0.0
        %799 = vmatpush1.msra.mxu0 0.0
        %800 = vmatprep.subr.mxu0 0.0
        %801 = vmatpush1.msra.mxu0 0.0
        %802 = vmatprep.subr.mxu0 0.0
        %803 = vmatpush1.msra.mxu0 0.0
        %804 = vmatprep.subr.mxu0 0.0
        %805 = vmatpush1.msra.mxu0 0.0
        %806 = vmatprep.subr.mxu0 0.0
        %807 = vmatpush1.msra.mxu0 0.0
        %808 = vmatprep.subr.mxu0 0.0
        %809 = vmatpush1.msra.mxu0 0.0
        %810 = vmatprep.subr.mxu0 0.0
        %811 = vmatpush1.msra.mxu0 0.0
        %812 = vmatprep.subr.mxu0 0.0
        %813 = vmatpush1.msra.mxu0 0.0
        %814 = vmatprep.subr.mxu0 0.0
        %815 = vmatpush1.msra.mxu0 0.0
        %816 = vmatprep.subr.mxu0 0.0
        %v817 = vand.u32 %v702, 4294901760
        %v818 = vsub.f32 %v702, %v817
        %v819 = vand.u32 %v818, 4294901760
        %v820 = vsub.f32 %v818, %v819
        %v821 = vand.u32 %v820, 4294901760
        %822 = vmatpush1.msra.mxu0 %v821
        %823 = vmatprep.subr.mxu0 0.0
        %v824 = vand.u32 %v701, 4294901760
        %v825 = vsub.f32 %v701, %v824
        %v826 = vand.u32 %v825, 4294901760
        %v827 = vsub.f32 %v825, %v826
        %v828 = vand.u32 %v827, 4294901760
        %829 = vmatpush1.msra.mxu0 %v828
        %830 = vmatprep.subr.mxu0 0.0
        %v831 = vand.u32 %v700, 4294901760
        %v832 = vsub.f32 %v700, %v831
        %v833 = vand.u32 %v832, 4294901760
        %v834 = vsub.f32 %v832, %v833
        %v835 = vand.u32 %v834, 4294901760
        %836 = vmatpush1.msra.mxu0 %v835
        %837 = vmatprep.subr.mxu0 0.0
        %v838 = vand.u32 %v699, 4294901760
        %v839 = vsub.f32 %v699, %v838
        %v840 = vand.u32 %v839, 4294901760
        %v841 = vsub.f32 %v839, %v840
        %v842 = vand.u32 %v841, 4294901760
        %843 = vmatpush1.msra.mxu0 %v842
        %844 = vmatprep.subr.mxu0 0.0
        %845 = vmatpush2.msra.mxu0 0.0
        %846 = vmatprep.subr.mxu0 0.0
        %847 = vmatpush2.msra.mxu0 0.0
        %848 = vmatprep.subr.mxu0 0.0
        %849 = vmatpush2.msra.mxu0 0.0
        %850 = vmatprep.subr.mxu0 0.0
        %851 = vmatpush2.msra.mxu0 0.0
        %852 = vmatprep.subr.mxu0 0.0
        %853 = vmatpush2.msra.mxu0 0.0
        %854 = vmatprep.subr.mxu0 0.0
        %855 = vmatpush2.msra.mxu0 0.0
        %856 = vmatprep.subr.mxu0 0.0
        %857 = vmatpush2.msra.mxu0 0.0
        %858 = vmatprep.subr.mxu0 0.0
        %859 = vmatpush2.msra.mxu0 0.0
        %860 = vmatprep.subr.mxu0 0.0
        %861 = vmatpush2.msra.mxu0 0.0
        %862 = vmatprep.subr.mxu0 0.0
        %863 = vmatpush2.msra.mxu0 0.0
        %864 = vmatprep.subr.mxu0 0.0
        %865 = vmatpush2.msra.mxu0 0.0
        %866 = vmatprep.subr.mxu0 0.0
        %867 = vmatpush2.msra.mxu0 0.0
        %868 = vmatprep.subr.mxu0 0.0
        %869 = vmatpush2.msra.mxu0 0.0
        %870 = vmatprep.subr.mxu0 0.0
        %871 = vmatpush2.msra.mxu0 0.0
        %872 = vmatprep.subr.mxu0 0.0
        %873 = vmatpush2.msra.mxu0 0.0
        %874 = vmatprep.subr.mxu0 0.0
        %875 = vmatpush2.msra.mxu0 0.0
        %876 = vmatprep.mubr.f32.mxu0 0.0
        %v877 = vand.u32 %v711, 4294901760
        %878 = vmatmul.mubr.f32.gmra.mxu0 %v877
        %v879 = vpop.f32.mrf.mxu0
        %v880 = vadd.f32 %v789, %v879
        %v881 = vpop.f32.mrf.mxu0
        %882 = vdwg.mxu0
        %883 = vmatprep.subr.mxu0 0.0
        %884 = vmatpush1.msra.mxu0 0.0
        %885 = vmatprep.subr.mxu0 0.0
        %886 = vmatpush1.msra.mxu0 0.0
        %887 = vmatprep.subr.mxu0 0.0
        %888 = vmatpush1.msra.mxu0 0.0
        %889 = vmatprep.subr.mxu0 0.0
        %890 = vmatpush1.msra.mxu0 0.0
        %891 = vmatprep.subr.mxu0 0.0
        %892 = vmatpush1.msra.mxu0 0.0
        %893 = vmatprep.subr.mxu0 0.0
        %894 = vmatpush1.msra.mxu0 0.0
        %895 = vmatprep.subr.mxu0 0.0
        %896 = vmatpush1.msra.mxu0 0.0
        %897 = vmatprep.subr.mxu0 0.0
        %898 = vmatpush1.msra.mxu0 0.0
        %899 = vmatprep.subr.mxu0 0.0
        %900 = vmatpush1.msra.mxu0 0.0
        %901 = vmatprep.subr.mxu0 0.0
        %902 = vmatpush1.msra.mxu0 0.0
        %903 = vmatprep.subr.mxu0 0.0
        %904 = vmatpush1.msra.mxu0 0.0
        %905 = vmatprep.subr.mxu0 0.0
        %906 = vmatpush1.msra.mxu0 0.0
        %907 = vmatprep.subr.mxu0 0.0
        %v908 = vand.u32 %v702, 4294901760
        %v909 = vsub.f32 %v702, %v908
        %910 = vmatpush1.msra.mxu0 %v909
        %911 = vmatprep.subr.mxu0 0.0
        %v912 = vand.u32 %v701, 4294901760
        %v913 = vsub.f32 %v701, %v912
        %914 = vmatpush1.msra.mxu0 %v913
        %915 = vmatprep.subr.mxu0 0.0
        %v916 = vand.u32 %v700, 4294901760
        %v917 = vsub.f32 %v700, %v916
        %918 = vmatpush1.msra.mxu0 %v917
        %919 = vmatprep.subr.mxu0 0.0
        %v920 = vand.u32 %v699, 4294901760
        %v921 = vsub.f32 %v699, %v920
        %922 = vmatpush1.msra.mxu0 %v921
        %923 = vmatprep.subr.mxu0 0.0
        %924 = vmatpush2.msra.mxu0 0.0
        %925 = vmatprep.subr.mxu0 0.0
        %926 = vmatpush2.msra.mxu0 0.0
        %927 = vmatprep.subr.mxu0 0.0
        %928 = vmatpush2.msra.mxu0 0.0
        %929 = vmatprep.subr.mxu0 0.0
        %930 = vmatpush2.msra.mxu0 0.0
        %931 = vmatprep.subr.mxu0 0.0
        %932 = vmatpush2.msra.mxu0 0.0
        %933 = vmatprep.subr.mxu0 0.0
        %934 = vmatpush2.msra.mxu0 0.0
        %935 = vmatprep.subr.mxu0 0.0
        %936 = vmatpush2.msra.mxu0 0.0
        %937 = vmatprep.subr.mxu0 0.0
        %938 = vmatpush2.msra.mxu0 0.0
        %939 = vmatprep.subr.mxu0 0.0
        %940 = vmatpush2.msra.mxu0 0.0
        %941 = vmatprep.subr.mxu0 0.0
        %942 = vmatpush2.msra.mxu0 0.0
        %943 = vmatprep.subr.mxu0 0.0
        %944 = vmatpush2.msra.mxu0 0.0
        %945 = vmatprep.subr.mxu0 0.0
        %946 = vmatpush2.msra.mxu0 0.0
        %947 = vmatprep.subr.mxu0 0.0
        %948 = vmatpush2.msra.mxu0 0.0
        %949 = vmatprep.subr.mxu0 0.0
        %950 = vmatpush2.msra.mxu0 0.0
        %951 = vmatprep.subr.mxu0 0.0
        %952 = vmatpush2.msra.mxu0 0.0
        %953 = vmatprep.subr.mxu0 0.0
        %954 = vmatpush2.msra.mxu0 0.0
        %955 = vmatprep.mubr.f32.mxu0 0.0
        %v956 = vand.u32 %v711, 4294901760
        %v957 = vsub.f32 %v711, %v956
        %958 = vmatmul.mubr.f32.gmra.mxu0 %v957
        %v959 = vpop.f32.mrf.mxu0
        %v960 = vadd.f32 %v880, %v959
        %v961 = vpop.f32.mrf.mxu0
        %962 = vdwg.mxu0
        %963 = vmatprep.subr.mxu0 0.0
        %964 = vmatpush1.msra.mxu0 0.0
        %965 = vmatprep.subr.mxu0 0.0
        %966 = vmatpush1.msra.mxu0 0.0
        %967 = vmatprep.subr.mxu0 0.0
        %968 = vmatpush1.msra.mxu0 0.0
        %969 = vmatprep.subr.mxu0 0.0
        %970 = vmatpush1.msra.mxu0 0.0
        %971 = vmatprep.subr.mxu0 0.0
        %972 = vmatpush1.msra.mxu0 0.0
        %973 = vmatprep.subr.mxu0 0.0
        %974 = vmatpush1.msra.mxu0 0.0
        %975 = vmatprep.subr.mxu0 0.0
        %976 = vmatpush1.msra.mxu0 0.0
        %977 = vmatprep.subr.mxu0 0.0
        %978 = vmatpush1.msra.mxu0 0.0
        %979 = vmatprep.subr.mxu0 0.0
        %980 = vmatpush1.msra.mxu0 0.0
        %981 = vmatprep.subr.mxu0 0.0
        %982 = vmatpush1.msra.mxu0 0.0
        %983 = vmatprep.subr.mxu0 0.0
        %984 = vmatpush1.msra.mxu0 0.0
        %985 = vmatprep.subr.mxu0 0.0
        %986 = vmatpush1.msra.mxu0 0.0
        %987 = vmatprep.subr.mxu0 0.0
        %v988 = vand.u32 %v702, 4294901760
        %989 = vmatpush1.msra.mxu0 %v988
        %990 = vmatprep.subr.mxu0 0.0
        %v991 = vand.u32 %v701, 4294901760
        %992 = vmatpush1.msra.mxu0 %v991
        %993 = vmatprep.subr.mxu0 0.0
        %v994 = vand.u32 %v700, 4294901760
        %995 = vmatpush1.msra.mxu0 %v994
        %996 = vmatprep.subr.mxu0 0.0
        %v997 = vand.u32 %v699, 4294901760
        %998 = vmatpush1.msra.mxu0 %v997
        %999 = vmatprep.subr.mxu0 0.0
        %1000 = vmatpush2.msra.mxu0 0.0
        %1001 = vmatprep.subr.mxu0 0.0
        %1002 = vmatpush2.msra.mxu0 0.0
        %1003 = vmatprep.subr.mxu0 0.0
        %1004 = vmatpush2.msra.mxu0 0.0
        %1005 = vmatprep.subr.mxu0 0.0
        %1006 = vmatpush2.msra.mxu0 0.0
        %1007 = vmatprep.subr.mxu0 0.0
        %1008 = vmatpush2.msra.mxu0 0.0
        %1009 = vmatprep.subr.mxu0 0.0
        %1010 = vmatpush2.msra.mxu0 0.0
        %1011 = vmatprep.subr.mxu0 0.0
        %1012 = vmatpush2.msra.mxu0 0.0
        %1013 = vmatprep.subr.mxu0 0.0
        %1014 = vmatpush2.msra.mxu0 0.0
        %1015 = vmatprep.subr.mxu0 0.0
        %1016 = vmatpush2.msra.mxu0 0.0
        %1017 = vmatprep.subr.mxu0 0.0
        %1018 = vmatpush2.msra.mxu0 0.0
        %1019 = vmatprep.subr.mxu0 0.0
        %1020 = vmatpush2.msra.mxu0 0.0
        %1021 = vmatprep.subr.mxu0 0.0
        %1022 = vmatpush2.msra.mxu0 0.0
        %1023 = vmatprep.subr.mxu0 0.0
        %1024 = vmatpush2.msra.mxu0 0.0
        %1025 = vmatprep.subr.mxu0 0.0
        %1026 = vmatpush2.msra.mxu0 0.0
        %1027 = vmatprep.subr.mxu0 0.0
        %1028 = vmatpush2.msra.mxu0 0.0
        %1029 = vmatprep.subr.mxu0 0.0
        %1030 = vmatpush2.msra.mxu0 0.0
        %1031 = vmatprep.mubr.f32.mxu0 0.0
        %v1032 = vand.u32 %v711, 4294901760
        %v1033 = vsub.f32 %v711, %v1032
        %v1034 = vand.u32 %v1033, 4294901760
        %1035 = vmatmul.mubr.f32.gmra.mxu0 %v1034
        %v1036 = vpop.f32.mrf.mxu0
        %v1037 = vadd.f32 %v960, %v1036
        %v1038 = vpop.f32.mrf.mxu0
        %1039 = vdwg.mxu0
        %1040 = vmatprep.subr.mxu0 0.0
        %1041 = vmatpush1.msra.mxu0 0.0
        %1042 = vmatprep.subr.mxu0 0.0
        %1043 = vmatpush1.msra.mxu0 0.0
        %1044 = vmatprep.subr.mxu0 0.0
        %1045 = vmatpush1.msra.mxu0 0.0
        %1046 = vmatprep.subr.mxu0 0.0
        %1047 = vmatpush1.msra.mxu0 0.0
        %1048 = vmatprep.subr.mxu0 0.0
        %1049 = vmatpush1.msra.mxu0 0.0
        %1050 = vmatprep.subr.mxu0 0.0
        %1051 = vmatpush1.msra.mxu0 0.0
        %1052 = vmatprep.subr.mxu0 0.0
        %1053 = vmatpush1.msra.mxu0 0.0
        %1054 = vmatprep.subr.mxu0 0.0
        %1055 = vmatpush1.msra.mxu0 0.0
        %1056 = vmatprep.subr.mxu0 0.0
        %1057 = vmatpush1.msra.mxu0 0.0
        %1058 = vmatprep.subr.mxu0 0.0
        %1059 = vmatpush1.msra.mxu0 0.0
        %1060 = vmatprep.subr.mxu0 0.0
        %1061 = vmatpush1.msra.mxu0 0.0
        %1062 = vmatprep.subr.mxu0 0.0
        %1063 = vmatpush1.msra.mxu0 0.0
        %1064 = vmatprep.subr.mxu0 0.0
        %v1065 = vand.u32 %v702, 4294901760
        %v1066 = vsub.f32 %v702, %v1065
        %v1067 = vand.u32 %v1066, 4294901760
        %1068 = vmatpush1.msra.mxu0 %v1067
        %1069 = vmatprep.subr.mxu0 0.0
        %v1070 = vand.u32 %v701, 4294901760
        %v1071 = vsub.f32 %v701, %v1070
        %v1072 = vand.u32 %v1071, 4294901760
        %1073 = vmatpush1.msra.mxu0 %v1072
        %1074 = vmatprep.subr.mxu0 0.0
        %v1075 = vand.u32 %v700, 4294901760
        %v1076 = vsub.f32 %v700, %v1075
        %v1077 = vand.u32 %v1076, 4294901760
        %1078 = vmatpush1.msra.mxu0 %v1077
        %1079 = vmatprep.subr.mxu0 0.0
        %v1080 = vand.u32 %v699, 4294901760
        %v1081 = vsub.f32 %v699, %v1080
        %v1082 = vand.u32 %v1081, 4294901760
        %1083 = vmatpush1.msra.mxu0 %v1082
        %1084 = vmatprep.subr.mxu0 0.0
        %1085 = vmatpush2.msra.mxu0 0.0
        %1086 = vmatprep.subr.mxu0 0.0
        %1087 = vmatpush2.msra.mxu0 0.0
        %1088 = vmatprep.subr.mxu0 0.0
        %1089 = vmatpush2.msra.mxu0 0.0
        %1090 = vmatprep.subr.mxu0 0.0
        %1091 = vmatpush2.msra.mxu0 0.0
        %1092 = vmatprep.subr.mxu0 0.0
        %1093 = vmatpush2.msra.mxu0 0.0
        %1094 = vmatprep.subr.mxu0 0.0
        %1095 = vmatpush2.msra.mxu0 0.0
        %1096 = vmatprep.subr.mxu0 0.0
        %1097 = vmatpush2.msra.mxu0 0.0
        %1098 = vmatprep.subr.mxu0 0.0
        %1099 = vmatpush2.msra.mxu0 0.0
        %1100 = vmatprep.subr.mxu0 0.0
        %1101 = vmatpush2.msra.mxu0 0.0
        %1102 = vmatprep.subr.mxu0 0.0
        %1103 = vmatpush2.msra.mxu0 0.0
        %1104 = vmatprep.subr.mxu0 0.0
        %1105 = vmatpush2.msra.mxu0 0.0
        %1106 = vmatprep.subr.mxu0 0.0
        %1107 = vmatpush2.msra.mxu0 0.0
        %1108 = vmatprep.subr.mxu0 0.0
        %1109 = vmatpush2.msra.mxu0 0.0
        %1110 = vmatprep.subr.mxu0 0.0
        %1111 = vmatpush2.msra.mxu0 0.0
        %1112 = vmatprep.subr.mxu0 0.0
        %1113 = vmatpush2.msra.mxu0 0.0
        %1114 = vmatprep.subr.mxu0 0.0
        %1115 = vmatpush2.msra.mxu0 0.0
        %1116 = vmatprep.mubr.f32.mxu0 0.0
        %v1117 = vand.u32 %v711, 4294901760
        %1118 = vmatmul.mubr.f32.gmra.mxu0 %v1117
        %v1119 = vpop.f32.mrf.mxu0
        %v1120 = vadd.f32 %v1037, %v1119
        %v1121 = vpop.f32.mrf.mxu0
        %1122 = vdwg.mxu0
        %1123 = vmatprep.subr.mxu0 0.0
        %1124 = vmatpush1.msra.mxu0 0.0
        %1125 = vmatprep.subr.mxu0 0.0
        %1126 = vmatpush1.msra.mxu0 0.0
        %1127 = vmatprep.subr.mxu0 0.0
        %1128 = vmatpush1.msra.mxu0 0.0
        %1129 = vmatprep.subr.mxu0 0.0
        %1130 = vmatpush1.msra.mxu0 0.0
        %1131 = vmatprep.subr.mxu0 0.0
        %1132 = vmatpush1.msra.mxu0 0.0
        %1133 = vmatprep.subr.mxu0 0.0
        %1134 = vmatpush1.msra.mxu0 0.0
        %1135 = vmatprep.subr.mxu0 0.0
        %1136 = vmatpush1.msra.mxu0 0.0
        %1137 = vmatprep.subr.mxu0 0.0
        %1138 = vmatpush1.msra.mxu0 0.0
        %1139 = vmatprep.subr.mxu0 0.0
        %1140 = vmatpush1.msra.mxu0 0.0
        %1141 = vmatprep.subr.mxu0 0.0
        %1142 = vmatpush1.msra.mxu0 0.0
        %1143 = vmatprep.subr.mxu0 0.0
        %1144 = vmatpush1.msra.mxu0 0.0
        %1145 = vmatprep.subr.mxu0 0.0
        %1146 = vmatpush1.msra.mxu0 0.0
        %1147 = vmatprep.subr.mxu0 0.0
        %v1148 = vand.u32 %v702, 4294901760
        %1149 = vmatpush1.msra.mxu0 %v1148
        %1150 = vmatprep.subr.mxu0 0.0
        %v1151 = vand.u32 %v701, 4294901760
        %1152 = vmatpush1.msra.mxu0 %v1151
        %1153 = vmatprep.subr.mxu0 0.0
        %v1154 = vand.u32 %v700, 4294901760
        %1155 = vmatpush1.msra.mxu0 %v1154
        %1156 = vmatprep.subr.mxu0 0.0
        %v1157 = vand.u32 %v699, 4294901760
        %1158 = vmatpush1.msra.mxu0 %v1157
        %1159 = vmatprep.subr.mxu0 0.0
        %1160 = vmatpush2.msra.mxu0 0.0
        %1161 = vmatprep.subr.mxu0 0.0
        %1162 = vmatpush2.msra.mxu0 0.0
        %1163 = vmatprep.subr.mxu0 0.0
        %1164 = vmatpush2.msra.mxu0 0.0
        %1165 = vmatprep.subr.mxu0 0.0
        %1166 = vmatpush2.msra.mxu0 0.0
        %1167 = vmatprep.subr.mxu0 0.0
        %1168 = vmatpush2.msra.mxu0 0.0
        %1169 = vmatprep.subr.mxu0 0.0
        %1170 = vmatpush2.msra.mxu0 0.0
        %1171 = vmatprep.subr.mxu0 0.0
        %1172 = vmatpush2.msra.mxu0 0.0
        %1173 = vmatprep.subr.mxu0 0.0
        %1174 = vmatpush2.msra.mxu0 0.0
        %1175 = vmatprep.subr.mxu0 0.0
        %1176 = vmatpush2.msra.mxu0 0.0
        %1177 = vmatprep.subr.mxu0 0.0
        %1178 = vmatpush2.msra.mxu0 0.0
        %1179 = vmatprep.subr.mxu0 0.0
        %1180 = vmatpush2.msra.mxu0 0.0
        %1181 = vmatprep.subr.mxu0 0.0
        %1182 = vmatpush2.msra.mxu0 0.0
        %1183 = vmatprep.subr.mxu0 0.0
        %1184 = vmatpush2.msra.mxu0 0.0
        %1185 = vmatprep.subr.mxu0 0.0
        %1186 = vmatpush2.msra.mxu0 0.0
        %1187 = vmatprep.subr.mxu0 0.0
        %1188 = vmatpush2.msra.mxu0 0.0
        %1189 = vmatprep.subr.mxu0 0.0
        %1190 = vmatpush2.msra.mxu0 0.0
        %1191 = vmatprep.mubr.f32.mxu0 0.0
        %v1192 = vand.u32 %v711, 4294901760
        %1193 = vmatmul.mubr.f32.gmra.mxu0 %v1192
        %v1194 = vpop.f32.mrf.mxu0
        %v1195 = vadd.f32 %v1120, %v1194
        %v1196 = vpop.f32.mrf.mxu0
        %1197 = vdwg.mxu0
        %1198 = vst.msk [vmem:[%s227] sm:$0xff] %vm709, %v1195
        %s1199 = sand.u32 %s119, 1
        %s1200 = scalar_lea.sflag [#allocation4], %s1199
        %s1201 = sand.u32 %s119, 1
        %s1202 = smul.addr %s1201, 8
        %s1203 = scalar_lea.vmem [#allocation7], %s1202
        // Predicated region
        $region45: #{encoder_embedding.1} parent=35 // pred_check
          %p1204 = pneg %p129
        $region46: #{encoder_embedding.1} parent=35 // pred_check_branch
          %1206 = sbr.rel (%p1204) target = $region48
        $region47: #{encoder_embedding.1} parent=35 // pred_region
          %s1208 = ssub.s32 128, 128
          %1209 = vsyncadd %s1200, %s1208
          %s1210 = smul.addr %s22, 128
          %s1211 = scalar_lea.hbm %s4, %s1210
          %s1213 = sshll.u32 %s1203, 4
          %s1214 = int_to_ptr.vmem [resolvable:$true] %s1213
          %1216 = dma.vmem_to_hbm [thread:$0]  %s1214, 128, %s1211, %s1200
        $region48: #{encoder_embedding.1} parent=35 // pred_fallthru
          _
      $region36: #{encoder_embedding.1} parent=5 // pred_fallthru
        _
      %p1217 = scmp.le.s32.totalorder 2, %s17
      // Predicated region
      $region49: #{encoder_embedding.1} parent=5 // pred_check
        %p1218 = pneg %p1217
      $region50: #{encoder_embedding.1} parent=5 // pred_check_branch
        %1220 = sbr.rel (%p1218) target = $region52
      $region51: #{encoder_embedding.1} parent=5 // pred_region
        %s1221 = ssub.s32 %s17, 2
        // Predicated region
        $region53: #{encoder_embedding.1} parent=51 // pred_check
          %p1222 = pneg %p135
        $region54: #{encoder_embedding.1} parent=51 // pred_check_branch
          %1224 = sbr.rel (%p1222) target = $region56
        $region55: #{encoder_embedding.1} parent=51 // pred_region
          %s1225 = sand.u32 %s120, 1
          %s1226 = scalar_lea.sflag [#allocation4], %s1225
          %s1227 = sand.u32 %s120, 1
          %s1228 = smul.addr %s1227, 8
          %s1229 = scalar_lea.vmem [#allocation7], %s1228
          %1230 = dma.done %s1226, 128
        $region56: #{encoder_embedding.1} parent=51 // pred_fallthru
          _
      $region52: #{encoder_embedding.1} parent=5 // pred_fallthru
        _
    $region6: #{encoder_embedding.1} parent=1 // loop_footer
      %s21 = sadd.s32 1, %s17
    $region7: #{encoder_embedding.1} parent=1 // loop_footer_branch
      %16 = sbr.rel target = $region3
    $region8: #{encoder_embedding.1} parent=1 // loop_exit
      _
    %1231 = vsyncpa [#allocation3], 1
    %s1232 = scalar_lea.sflag [#allocation3], 1
    %1233 = vsyncpa %s1232, 1
    %1234 = vsyncpa [#allocation6], 1
    %1235 = vsyncpa [#allocation4], 1
    %s1236 = scalar_lea.sflag [#allocation4], 1
    %1237 = vsyncpa %s1236, 1

</llo_original>
